<compile_context>
chip_gen: v7x
topology: tpu7x:2x2x1
jax: 0.10.0
libtpu: 0.0.40
codegen_flags: <defaults>
</compile_context>

<pallas_src>
import jax
import jax.numpy as jnp
from jax.experimental import pallas as pl
from jax.experimental.pallas import tpu as pltpu


def _attention_kernel(q_ref, tgt_ref, enc_ref, mask_ref, wct_ref, wcc_ref,
                      out_ref, wts_ref):
    q = q_ref[...]          # [TB, D_in]   f32  (= tgt @ W_src)
    tgt = tgt_ref[...]      # [TB, D_out]  f32
    enc = enc_ref[...]      # [T, TB, D_in]     time-major encoder block
    mask = mask_ref[...]    # [T, TB, 1]   int32 (nonzero = padded position)

    # scores[t, b] = sum_d q[b, d] * enc[t, b, d]            -> [T, TB, 1]
    scores = jnp.sum(enc * q[None, :, :], axis=-1, keepdims=True)
    scores = jnp.where(mask != 0, -jnp.inf, scores)          # masked_fill_(-inf)

    # softmax over src_time (axis 0); divide on the EUP via approx reciprocal.
    m = jnp.max(scores, axis=0, keepdims=True)               # [1, TB, 1]
    e = jnp.exp(scores - m)                                  # [T, TB, 1]
    denom = jnp.sum(e, axis=0, keepdims=True)                # [1, TB, 1]
    w = e * pl.reciprocal(denom, approx=True)                # [T, TB, 1]
    wts_ref[...] = w.astype(wts_ref.dtype)

    # attn_context[b, d] = sum_t w[t, b] * enc[t, b, d]      -> [TB, D_in]
    ctx = jnp.sum(enc * w, axis=0)

    # attn_out = tanh(cat([tgt, ctx], dim=1) @ W_chp^T)
    # (the concat is folded into two MXU matmuls against the split weight)
    pre = (jnp.dot(tgt, wct_ref[...], preferred_element_type=jnp.float32)
           + jnp.dot(ctx, wcc_ref[...], preferred_element_type=jnp.float32))
    out_ref[...] = jnp.tanh(pre).astype(out_ref.dtype)


def _pick_batch_tile(B, T, D_in, itemsize, budget_bytes=24 << 20):
    """Largest batch tile that keeps the (8,128) tiling rule happy (multiple of 8
    dividing B, or the full batch) and whose double-buffered encoder block fits a
    conservative VMEM budget."""
    cands = [c for c in (128, 64, 32, 16, 8) if B % c == 0] or [B]
    for tb in cands:
        if 2 * T * tb * D_in * itemsize <= budget_bytes:
            return tb
    return cands[-1]


def attention_forward(tgt_input, encoder_out, src_mask, w_src, w_chp):
    """
    tgt_input:   [B, D_out]
    encoder_out: [T, B, D_in]  (PyTorch time-major convention; consumed as-is)
    src_mask:    [B, T] bool (True = pad) or None
    w_src:       [D_out, D_in]          (nn.Linear weight layout: [out, in])
    w_chp:       [D_out, D_in + D_out]
    returns (attn_out [B, D_out], attn_weights [B, T])
    """
    B, D_out = tgt_input.shape
    T, B_enc, D_in = encoder_out.shape
    assert B_enc == B

    itemsize = jnp.dtype(encoder_out.dtype).itemsize
    TB = _pick_batch_tile(B, T, D_in, itemsize)
    grid = (B // TB,)

    # q = tgt @ W_src : folds the encoder projection onto the (tiny) decoder side.
    q = (tgt_input @ w_src).astype(jnp.float32)                      # [B, D_in]

    # Tiny layout plumbing: mask in time-major [T, B, 1] to match the encoder block.
    if src_mask is None:
        mask_tb = jnp.zeros((T, B, 1), jnp.int32)
    else:
        mask_tb = jnp.transpose(src_mask.astype(jnp.int32))[:, :, None]

    # torch.cat order is [tgt (D_out), attn_context (D_in)] -> split W_chp accordingly.
    wct_t = jnp.transpose(w_chp[:, :D_out])                          # [D_out, D_out]
    wcc_t = jnp.transpose(w_chp[:, D_out:])                          # [D_in,  D_out]

    # Explicit VMEM budget: double-buffered blocks + resident weights + margin,
    # clamped to stay under v7x's 64 MiB per-core VMEM.
    pad8 = lambda n: ((n + 7) // 8) * 8
    lane_padded = T * pad8(TB) * 128 * 4           # mask / wts tiles (lane dim padded)
    blk_bytes = (T * TB * D_in * itemsize          # encoder block
                 + 4 * (TB * D_in + 2 * TB * D_out)
                 + 2 * lane_padded)
    weight_bytes = 4 * (D_out * D_out + D_in * D_out)
    vmem_limit = int(min(max(2 * blk_bytes + 2 * weight_bytes + (4 << 20),
                             32 << 20), 60 << 20))

    attn_out, wts_tb = pl.pallas_call(
        _attention_kernel,
        out_shape=(jax.ShapeDtypeStruct((B, D_out), tgt_input.dtype),
                   jax.ShapeDtypeStruct((T, B, 1), jnp.float32)),
        grid_spec=pltpu.PrefetchScalarGridSpec(
            num_scalar_prefetch=0,
            grid=grid,
            in_specs=[
                pl.BlockSpec((TB, D_in), lambda b: (b, 0)),         # q = tgt @ W_src
                pl.BlockSpec((TB, D_out), lambda b: (b, 0)),        # tgt
                pl.BlockSpec((T, TB, D_in), lambda b: (0, b, 0)),   # encoder_out (time-major)
                pl.BlockSpec((T, TB, 1), lambda b: (0, b, 0)),      # mask (time-major)
                pl.BlockSpec((D_out, D_out), lambda b: (0, 0)),     # W_chp[:, :D_out]^T
                pl.BlockSpec((D_in, D_out), lambda b: (0, 0)),      # W_chp[:, D_out:]^T
            ],
            out_specs=[
                pl.BlockSpec((TB, D_out), lambda b: (b, 0)),        # attn_out
                pl.BlockSpec((T, TB, 1), lambda b: (0, b, 0)),      # attn_weights (time-major)
            ],
        ),
        compiler_params=pltpu.CompilerParams(
            dimension_semantics=("parallel",),
            vmem_limit_bytes=vmem_limit),
    )(q, tgt_input, encoder_out, mask_tb, wct_t, wcc_t)

    attn_weights = jnp.transpose(wts_tb[:, :, 0])    # [B, T]; tiny (B*T) fix-up only
    return attn_out, attn_weights


def _reference(tgt_input, encoder_out, src_mask, w_src, w_chp):
    """Pure-JAX reference mirroring the PyTorch forward."""
    enc = jnp.transpose(encoder_out, (1, 0, 2))                        # [B, T, D_in]
    proj = jnp.einsum('btd,od->bto', enc, w_src)                       # [B, T, D_out]
    scores = jnp.einsum('bo,bto->bt', tgt_input, proj)                 # [B, T]
    if src_mask is not None:
        scores = jnp.where(src_mask, -jnp.inf, scores)
    w = jax.nn.softmax(scores, axis=-1)                                # [B, T]
    ctx = jnp.einsum('bt,btd->bd', w, enc)                             # [B, D_in]
    cph = jnp.concatenate([tgt_input, ctx], axis=1)                    # [B, D_out+D_in]
    out = jnp.tanh(cph @ w_chp.T)                                      # [B, D_out]
    return out, w


if __name__ == "__main__":
    B, T, D_in, D_out = 2, 8, 32, 16
    key = jax.random.PRNGKey(0)
    k1, k2, k3, k4 = jax.random.split(key, 4)

    tgt_input = jax.random.normal(k1, (B, D_out), jnp.float32)
    encoder_out = jax.random.normal(k2, (T, B, D_in), jnp.float32)
    # last 3 time steps of batch element 1 are padding
    src_mask = jnp.zeros((B, T), jnp.bool_).at[1, T - 3:].set(True)

    # deterministic synthetic parameters (nn.Linear layout [out_features, in_features])
    w_src = jax.random.normal(k3, (D_out, D_in), jnp.float32) * 0.1
    w_chp = jax.random.normal(k4, (D_out, D_in + D_out), jnp.float32) * 0.1

    attn_out, attn_weights = attention_forward(tgt_input, encoder_out, src_mask,
                                               w_src, w_chp)
    jax.block_until_ready((attn_out, attn_weights))

    ref_out, ref_w = _reference(tgt_input, encoder_out, src_mask, w_src, w_chp)
    # tolerance slightly loosened for the approx (EUP) reciprocal in the softmax
    assert jnp.allclose(attn_out, ref_out, atol=2e-3, rtol=2e-3)
    assert jnp.allclose(attn_weights, ref_w, atol=2e-3, rtol=2e-3)
    print("KERNEL_OK")
</pallas_src>

<mosaic_0001>
module attributes {stable_mosaic.version = 11 : i64} {
  func.func @_attention_kernel(%arg0: i32, %arg1: memref<2x32xf32, #tpu.memory_space<vmem>>, %arg2: memref<2x16xf32, #tpu.memory_space<vmem>>, %arg3: memref<8x2x32xf32, #tpu.memory_space<vmem>>, %arg4: memref<8x2x1xi32, #tpu.memory_space<vmem>>, %arg5: memref<16x16xf32, #tpu.memory_space<vmem>>, %arg6: memref<32x16xf32, #tpu.memory_space<vmem>>, %arg7: memref<2x16xf32, #tpu.memory_space<vmem>>, %arg8: memref<8x2x1xf32, #tpu.memory_space<vmem>>) attributes {dimension_semantics = [#tpu.dimension_semantics<parallel>], iteration_bounds = array<i64: 1>, scalar_prefetch = 0 : i64, scratch_operands = 0 : i64, tpu.core_type = #tpu.core_type<tc>, window_params = [{transform_indices = @transform_0, window_bounds = array<i64: 2, 32>}, {transform_indices = @transform_1, window_bounds = array<i64: 2, 16>}, {transform_indices = @transform_2, window_bounds = array<i64: 8, 2, 32>}, {transform_indices = @transform_3, window_bounds = array<i64: 8, 2, 1>}, {pipeline_mode = #tpu.pipeline_mode<synchronous>, transform_indices = @transform_4, window_bounds = array<i64: 16, 16>}, {pipeline_mode = #tpu.pipeline_mode<synchronous>, transform_indices = @transform_5, window_bounds = array<i64: 32, 16>}, {transform_indices = @transform_6, window_bounds = array<i64: 2, 16>}, {transform_indices = @transform_7, window_bounds = array<i64: 8, 2, 1>}]} {
    %c0 = arith.constant 0 : index
    %c0_0 = arith.constant 0 : index
    %0 = vector.load %arg1[%c0, %c0_0] : memref<2x32xf32, #tpu.memory_space<vmem>>, vector<2x32xf32>
    %c0_1 = arith.constant 0 : index
    %c0_2 = arith.constant 0 : index
    %1 = vector.load %arg2[%c0_1, %c0_2] : memref<2x16xf32, #tpu.memory_space<vmem>>, vector<2x16xf32>
    %c0_3 = arith.constant 0 : index
    %c0_4 = arith.constant 0 : index
    %c0_5 = arith.constant 0 : index
    %2 = vector.load %arg3[%c0_3, %c0_4, %c0_5] : memref<8x2x32xf32, #tpu.memory_space<vmem>>, vector<8x2x32xf32>
    %c0_6 = arith.constant 0 : index
    %c0_7 = arith.constant 0 : index
    %c0_8 = arith.constant 0 : index
    %3 = vector.load %arg4[%c0_6, %c0_7, %c0_8] : memref<8x2x1xi32, #tpu.memory_space<vmem>>, vector<8x2x1xi32>
    %4 = vector.shape_cast %0 : vector<2x32xf32> to vector<1x2x32xf32>
    %5 = vector.broadcast %4 : vector<1x2x32xf32> to vector<8x2x32xf32>
    %6 = arith.mulf %2, %5 : vector<8x2x32xf32>
    %cst = arith.constant dense<0.000000e+00> : vector<8x2xf32>
    %7 = vector.multi_reduction <add>, %6, %cst [2] : vector<8x2x32xf32> to vector<8x2xf32>
    %8 = vector.shape_cast %7 : vector<8x2xf32> to vector<8x2x1xf32>
    %c0_i32 = arith.constant 0 : i32
    %9 = vector.broadcast %c0_i32 : i32 to vector<8x2x1xi32>
    %10 = arith.cmpi ne, %3, %9 : vector<8x2x1xi32>
    %cst_9 = arith.constant 0xFF800000 : f32
    %11 = vector.broadcast %cst_9 : f32 to vector<8x2x1xf32>
    %12 = arith.select %10, %11, %8 : vector<8x2x1xi1>, vector<8x2x1xf32>
    %cst_10 = arith.constant dense<0xFF800000> : vector<2x1xf32>
    %13 = vector.multi_reduction <maximumf>, %12, %cst_10 [0] : vector<8x2x1xf32> to vector<2x1xf32>
    %14 = vector.shape_cast %13 : vector<2x1xf32> to vector<1x2x1xf32>
    %15 = vector.broadcast %14 : vector<1x2x1xf32> to vector<8x2x1xf32>
    %16 = arith.subf %12, %15 : vector<8x2x1xf32>
    %17 = math.exp %16 : vector<8x2x1xf32>
    %cst_11 = arith.constant dense<0.000000e+00> : vector<2x1xf32>
    %18 = vector.multi_reduction <add>, %17, %cst_11 [0] : vector<8x2x1xf32> to vector<2x1xf32>
    %19 = vector.shape_cast %18 : vector<2x1xf32> to vector<1x2x1xf32>
    %20 = tpu.reciprocal %19 {approx = true} : vector<1x2x1xf32> -> vector<1x2x1xf32>
    %21 = vector.broadcast %20 : vector<1x2x1xf32> to vector<8x2x1xf32>
    %22 = arith.mulf %17, %21 : vector<8x2x1xf32>
    %c0_12 = arith.constant 0 : index
    %c0_13 = arith.constant 0 : index
    %c0_14 = arith.constant 0 : index
    %23 = vector.load %arg8[%c0_12, %c0_13, %c0_14] : memref<8x2x1xf32, #tpu.memory_space<vmem>>, vector<8x2x1xf32>
    tpu.vector_store %arg8[%c0_12, %c0_13, %c0_14], %22 {strides = array<i32>} : memref<8x2x1xf32, #tpu.memory_space<vmem>>, vector<8x2x1xf32>,
    %24 = vector.broadcast %22 : vector<8x2x1xf32> to vector<8x2x32xf32>
    %25 = arith.mulf %2, %24 : vector<8x2x32xf32>
    %cst_15 = arith.constant dense<0.000000e+00> : vector<2x32xf32>
    %26 = vector.multi_reduction <add>, %25, %cst_15 [0] : vector<8x2x32xf32> to vector<2x32xf32>
    %c0_16 = arith.constant 0 : index
    %c0_17 = arith.constant 0 : index
    %27 = vector.load %arg5[%c0_16, %c0_17] : memref<16x16xf32, #tpu.memory_space<vmem>>, vector<16x16xf32>
    %cst_18 = arith.constant dense<0.000000e+00> : vector<2x16xf32>
    %28 = tpu.matmul %1, %27, %cst_18 {dimension_numbers = #tpu.dot_dimension_numbers<[1], [0], [0], [1], [0, 0, 1, 1], [], []>} : vector<2x16xf32>, vector<16x16xf32>, vector<2x16xf32> -> vector<2x16xf32>
    %c0_19 = arith.constant 0 : index
    %c0_20 = arith.constant 0 : index
    %29 = vector.load %arg6[%c0_19, %c0_20] : memref<32x16xf32, #tpu.memory_space<vmem>>, vector<32x16xf32>
    %cst_21 = arith.constant dense<0.000000e+00> : vector<2x16xf32>
    %30 = tpu.matmul %26, %29, %cst_21 {dimension_numbers = #tpu.dot_dimension_numbers<[1], [0], [0], [1], [0, 0, 1, 1], [], []>} : vector<2x32xf32>, vector<32x16xf32>, vector<2x16xf32> -> vector<2x16xf32>
    %31 = arith.addf %28, %30 : vector<2x16xf32>
    %32 = math.tanh %31 : vector<2x16xf32>
    %c0_22 = arith.constant 0 : index
    %c0_23 = arith.constant 0 : index
    %33 = vector.load %arg7[%c0_22, %c0_23] : memref<2x16xf32, #tpu.memory_space<vmem>>, vector<2x16xf32>
    tpu.vector_store %arg7[%c0_22, %c0_23], %32 {strides = array<i32>} : memref<2x16xf32, #tpu.memory_space<vmem>>, vector<2x16xf32>,
    return
  }
  func.func @transform_0(%arg0: i32) -> (i32, i32) {
    %c0_i32 = arith.constant 0 : i32
    %c0_i32_0 = arith.constant 0 : i32
    return %arg0, %c0_i32 : i32, i32
  }
  func.func @transform_1(%arg0: i32) -> (i32, i32) {
    %c0_i32 = arith.constant 0 : i32
    %c0_i32_0 = arith.constant 0 : i32
    return %arg0, %c0_i32 : i32, i32
  }
  func.func @transform_2(%arg0: i32) -> (i32, i32, i32) {
    %c0_i32 = arith.constant 0 : i32
    %c0_i32_0 = arith.constant 0 : i32
    %c0_i32_1 = arith.constant 0 : i32
    return %c0_i32, %arg0, %c0_i32_0 : i32, i32, i32
  }
  func.func @transform_3(%arg0: i32) -> (i32, i32, i32) {
    %c0_i32 = arith.constant 0 : i32
    %c0_i32_0 = arith.constant 0 : i32
    %c0_i32_1 = arith.constant 0 : i32
    return %c0_i32, %arg0, %c0_i32_0 : i32, i32, i32
  }
  func.func @transform_4(%arg0: i32) -> (i32, i32) {
    %c0_i32 = arith.constant 0 : i32
    %c0_i32_0 = arith.constant 0 : i32
    %c0_i32_1 = arith.constant 0 : i32
    return %c0_i32, %c0_i32_0 : i32, i32
  }
  func.func @transform_5(%arg0: i32) -> (i32, i32) {
    %c0_i32 = arith.constant 0 : i32
    %c0_i32_0 = arith.constant 0 : i32
    %c0_i32_1 = arith.constant 0 : i32
    return %c0_i32, %c0_i32_0 : i32, i32
  }
  func.func @transform_6(%arg0: i32) -> (i32, i32) {
    %c0_i32 = arith.constant 0 : i32
    %c0_i32_0 = arith.constant 0 : i32
    return %arg0, %c0_i32 : i32, i32
  }
  func.func @transform_7(%arg0: i32) -> (i32, i32, i32) {
    %c0_i32 = arith.constant 0 : i32
    %c0_i32_0 = arith.constant 0 : i32
    %c0_i32_1 = arith.constant 0 : i32
    return %c0_i32, %arg0, %c0_i32_0 : i32, i32, i32
  }
}

</mosaic_0001>

<llo_original>
// kernel: tpu_custom_call.1
$region0: #{tpu_custom_call.1}
  #allocation0 [shape = 'u32[]', space=smem, size = 0x4, offset = 0x4, fixed_abs, tag = 'smem constant byte address 0x4 - core index']
  #allocation1 [shape = 'u32[144,128]{1,0:T(1,128)}', space=vmem, size = 0x12000, scoped, tag = 'internal scratch']
  %s0 = inlined_call_operand.vmem [shape: f32[2,32], index: 0, kind: input, shape index: {}]
  %s1 = inlined_call_operand.vmem [shape: f32[2,16], index: 1, kind: input, shape index: {}]
  %s2 = inlined_call_operand.vmem [shape: f32[8,2,32], index: 2, kind: input, shape index: {}]
  %s3 = inlined_call_operand.vmem [shape: s32[8,2,1], index: 3, kind: input, shape index: {}]
  %s4 = inlined_call_operand.vmem [shape: f32[16,16], index: 4, kind: input, shape index: {}]
  %s5 = inlined_call_operand.vmem [shape: f32[32,16], index: 5, kind: input, shape index: {}]
  %s6 = inlined_call_operand.hbm [shape: f32[2,16], index: 6, kind: output, shape index: {0}]
  %s7 = inlined_call_operand.vmem [shape: f32[8,2,1], index: 7, kind: output, shape index: {1}]
  %8 = xla_tuple %s6, %s7
  %s9 = sld [smem:[#allocation0]]
  $region42: #{tpu_custom_call.1} parent=0
    _
  %s11 = ssub.s32 1, %s9
  %s12 = scalar_select 0, %s11, %s9
  $region1: #{tpu_custom_call.1} parent=0
    #allocation2 [shape = 'u8[1024]{0}', space=vmem, size = 0x400, scoped, tag = 'output window, operand 0, single buffered']
    #allocation3 [shape = 's32[1]{0}', space=sflag, size = 0x4, scoped, tag = 'scoped memory for tpu_custom_call.1']
    %13 = vsyncpa [#allocation3], 0
    // Predicated region
    $region2: #{tpu_custom_call.1} parent=1 // pred_check
      _
    $region3: #{tpu_custom_call.1} parent=1 // pred_check_branch
      %15 = sbr.rel (0) target = $region5
    $region4: #{tpu_custom_call.1} parent=1 // pred_region
      _
    $region5: #{tpu_custom_call.1} parent=1 // pred_fallthru
      _
    // Predicated region
    $region6: #{tpu_custom_call.1} parent=1 // pred_check
      _
    $region7: #{tpu_custom_call.1} parent=1 // pred_check_branch
      %17 = sbr.rel (0) target = $region9
    $region8: #{tpu_custom_call.1} parent=1 // pred_region
      _
    $region9: #{tpu_custom_call.1} parent=1 // pred_fallthru
      _
    // Predicated region
    $region10: #{tpu_custom_call.1} parent=1 // pred_check
      _
    $region11: #{tpu_custom_call.1} parent=1 // pred_check_branch
      %19 = sbr.rel (0) target = $region13
    $region12: #{tpu_custom_call.1} parent=1 // pred_region
      _
    $region13: #{tpu_custom_call.1} parent=1 // pred_fallthru
      _
    // Predicated region
    $region14: #{tpu_custom_call.1} parent=1 // pred_check
      _
    $region15: #{tpu_custom_call.1} parent=1 // pred_check_branch
      %21 = sbr.rel (0) target = $region17
    $region16: #{tpu_custom_call.1} parent=1 // pred_region
      _
    $region17: #{tpu_custom_call.1} parent=1 // pred_fallthru
      _
    // Predicated region
    $region18: #{tpu_custom_call.1} parent=1 // pred_check
      _
    $region19: #{tpu_custom_call.1} parent=1 // pred_check_branch
      %23 = sbr.rel (0) target = $region21
    $region20: #{tpu_custom_call.1} parent=1 // pred_region
      _
    $region21: #{tpu_custom_call.1} parent=1 // pred_fallthru
      _
    // Predicated region
    $region22: #{tpu_custom_call.1} parent=1 // pred_check
      _
    $region23: #{tpu_custom_call.1} parent=1 // pred_check_branch
      %25 = sbr.rel (0) target = $region25
    $region24: #{tpu_custom_call.1} parent=1 // pred_region
      _
    $region25: #{tpu_custom_call.1} parent=1 // pred_fallthru
      _
    %v26 = vld [vmem:[%s0] sm:$0x3]
    %v27 = vld [vmem:[%s1] sm:$0x3]
    %v28 = vld [vmem:[%s2] sm:$0x3]
    %v29 = vld [vmem:[%s2 + $0x2] sm:$0x3]
    %v30 = vld [vmem:[%s2 + $0x4] sm:$0x3]
    %v31 = vld [vmem:[%s2 + $0x6] sm:$0x3]
    %v32 = vld [vmem:[%s2 + $0x8] sm:$0x3]
    %v33 = vld [vmem:[%s2 + $0xa] sm:$0x3]
    %v34 = vld [vmem:[%s2 + $0xc] sm:$0x3]
    %v35 = vld [vmem:[%s2 + $0xe] sm:$0x3]
    %v36 = vld [vmem:[%s3] sm:$0x3]
    %v37 = vld [vmem:[%s3 + $0x2] sm:$0x3]
    %v38 = vld [vmem:[%s3 + $0x4] sm:$0x3]
    %v39 = vld [vmem:[%s3 + $0x6] sm:$0x3]
    %v40 = vld [vmem:[%s3 + $0x8] sm:$0x3]
    %v41 = vld [vmem:[%s3 + $0xa] sm:$0x3]
    %v42 = vld [vmem:[%s3 + $0xc] sm:$0x3]
    %v43 = vld [vmem:[%s3 + $0xe] sm:$0x3]
    %v44 = vmul.f32 %v28, %v26
    %v45 = vmul.f32 %v29, %v26
    %v46 = vmul.f32 %v30, %v26
    %v47 = vmul.f32 %v31, %v26
    %v48 = vmul.f32 %v32, %v26
    %v49 = vmul.f32 %v33, %v26
    %v50 = vmul.f32 %v34, %v26
    %v51 = vmul.f32 %v35, %v26
    %vm52 = vcmask 254976
    %v53 = vsel %vm52, %v44, 0.0
    %54 = vadd.xlane.f32.xlu0 %v53
    %v55 = vpop.xlane.xlu0 %54
    %v56 = vsel %vm52, %v45, 0.0
    %57 = vadd.xlane.f32.xlu0 %v56
    %v58 = vpop.xlane.xlu0 %57
    %v59 = vsel %vm52, %v46, 0.0
    %60 = vadd.xlane.f32.xlu0 %v59
    %v61 = vpop.xlane.xlu0 %60
    %v62 = vsel %vm52, %v47, 0.0
    %63 = vadd.xlane.f32.xlu0 %v62
    %v64 = vpop.xlane.xlu0 %63
    %v65 = vsel %vm52, %v48, 0.0
    %66 = vadd.xlane.f32.xlu0 %v65
    %v67 = vpop.xlane.xlu0 %66
    %v68 = vsel %vm52, %v49, 0.0
    %69 = vadd.xlane.f32.xlu0 %v68
    %v70 = vpop.xlane.xlu0 %69
    %v71 = vsel %vm52, %v50, 0.0
    %72 = vadd.xlane.f32.xlu0 %v71
    %v73 = vpop.xlane.xlu0 %72
    %v74 = vsel %vm52, %v51, 0.0
    %75 = vadd.xlane.f32.xlu0 %v74
    %v76 = vpop.xlane.xlu0 %75
    %vm77 = vcmp.ne.s32.totalorder %v36, 0
    %vm78 = vcmp.ne.s32.totalorder %v37, 0
    %vm79 = vcmp.ne.s32.totalorder %v38, 0
    %vm80 = vcmp.ne.s32.totalorder %v39, 0
    %vm81 = vcmp.ne.s32.totalorder %v40, 0
    %vm82 = vcmp.ne.s32.totalorder %v41, 0
    %vm83 = vcmp.ne.s32.totalorder %v42, 0
    %vm84 = vcmp.ne.s32.totalorder %v43, 0
    %v85 = vsel %vm77, -inf, %v55
    %v86 = vsel %vm78, -inf, %v58
    %v87 = vsel %vm79, -inf, %v61
    %v88 = vsel %vm80, -inf, %v64
    %v89 = vsel %vm81, -inf, %v67
    %v90 = vsel %vm82, -inf, %v70
    %v91 = vsel %vm83, -inf, %v73
    %v92 = vsel %vm84, -inf, %v76
    %vm93 = vcmask 1024
    %v94 = vsel %vm93, %v85, -inf
    %v95 = vsel %vm93, %v86, -inf
    %v96 = vsel %vm93, %v87, -inf
    %v97 = vsel %vm93, %v88, -inf
    %v98 = vsel %vm93, %v89, -inf
    %v99 = vmax.f32 %v94, %v98
    %v100 = vsel %vm93, %v90, -inf
    %v101 = vmax.f32 %v95, %v100
    %v102 = vsel %vm93, %v91, -inf
    %v103 = vmax.f32 %v96, %v102
    %v104 = vsel %vm93, %v92, -inf
    %v105 = vmax.f32 %v97, %v104
    %v106 = vmax.f32 %v99, %v101
    %v107 = vmax.f32 %v103, %v105
    %v108 = vmax.f32 %v106, %v107
    %v109 = vsub.f32 %v85, %v108
    %v110 = vsub.f32 %v86, %v108
    %v111 = vsub.f32 %v87, %v108
    %v112 = vsub.f32 %v88, %v108
    %v113 = vsub.f32 %v89, %v108
    %v114 = vsub.f32 %v90, %v108
    %v115 = vsub.f32 %v91, %v108
    %v116 = vsub.f32 %v92, %v108
    %v117 = vmul.f32 %v109, 1.442695
    %v118 = vpow.pop %v117
    %v119 = vmul.f32 %v110, 1.442695
    %v120 = vpow.pop %v119
    %v121 = vmul.f32 %v111, 1.442695
    %v122 = vpow.pop %v121
    %v123 = vmul.f32 %v112, 1.442695
    %v124 = vpow.pop %v123
    %v125 = vmul.f32 %v113, 1.442695
    %v126 = vpow.pop %v125
    %v127 = vmul.f32 %v114, 1.442695
    %v128 = vpow.pop %v127
    %v129 = vmul.f32 %v115, 1.442695
    %v130 = vpow.pop %v129
    %v131 = vmul.f32 %v116, 1.442695
    %v132 = vpow.pop %v131
    %v133 = vsel %vm93, %v118, 0.0
    %v134 = vsel %vm93, %v120, 0.0
    %v135 = vadd.f32 %v133, %v134
    %v136 = vsel %vm93, %v122, 0.0
    %v137 = vadd.f32 %v135, %v136
    %v138 = vsel %vm93, %v124, 0.0
    %v139 = vadd.f32 %v137, %v138
    %v140 = vsel %vm93, %v126, 0.0
    %v141 = vadd.f32 %v139, %v140
    %v142 = vsel %vm93, %v128, 0.0
    %v143 = vadd.f32 %v141, %v142
    %v144 = vsel %vm93, %v130, 0.0
    %v145 = vadd.f32 %v143, %v144
    %v146 = vsel %vm93, %v132, 0.0
    %v147 = vadd.f32 %v145, %v146
    %v148 = vrcp.pop %v147
    %v149 = vmul.f32 %v118, %v148
    %v150 = vmul.f32 %v120, %v148
    %v151 = vmul.f32 %v122, %v148
    %v152 = vmul.f32 %v124, %v148
    %v153 = vmul.f32 %v126, %v148
    %v154 = vmul.f32 %v128, %v148
    %v155 = vmul.f32 %v130, %v148
    %v156 = vmul.f32 %v132, %v148
    %157 = vst.msk [vmem:[%s7] sm:$0x3] %vm93, %v149
    %158 = vst.msk [vmem:[%s7 + $0x2] sm:$0x3] %vm93, %v150
    %159 = vst.msk [vmem:[%s7 + $0x4] sm:$0x3] %vm93, %v151
    %160 = vst.msk [vmem:[%s7 + $0x6] sm:$0x3] %vm93, %v152
    %161 = vst.msk [vmem:[%s7 + $0x8] sm:$0x3] %vm93, %v153
    %162 = vst.msk [vmem:[%s7 + $0xa] sm:$0x3] %vm93, %v154
    %163 = vst.msk [vmem:[%s7 + $0xc] sm:$0x3] %vm93, %v155
    %164 = vst.msk [vmem:[%s7 + $0xe] sm:$0x3] %vm93, %v156
    %166 = vset.pattern.permute.xlu0 0
    %167 = vperm.xlu0 %166, %v149
    %v168 = vpop.permute.xlu0 %167
    %171 = vset.pattern.permute.xlu0 0
    %172 = vperm.xlu0 %171, %v150
    %v173 = vpop.permute.xlu0 %172
    %176 = vset.pattern.permute.xlu0 0
    %177 = vperm.xlu0 %176, %v151
    %v178 = vpop.permute.xlu0 %177
    %181 = vset.pattern.permute.xlu0 0
    %182 = vperm.xlu0 %181, %v152
    %v183 = vpop.permute.xlu0 %182
    %186 = vset.pattern.permute.xlu0 0
    %187 = vperm.xlu0 %186, %v153
    %v188 = vpop.permute.xlu0 %187
    %191 = vset.pattern.permute.xlu0 0
    %192 = vperm.xlu0 %191, %v154
    %v193 = vpop.permute.xlu0 %192
    %196 = vset.pattern.permute.xlu0 0
    %197 = vperm.xlu0 %196, %v155
    %v198 = vpop.permute.xlu0 %197
    %201 = vset.pattern.permute.xlu0 0
    %202 = vperm.xlu0 %201, %v156
    %v203 = vpop.permute.xlu0 %202
    %v205 = vmul.f32 %v28, %v168
    %v206 = vmul.f32 %v29, %v173
    %v207 = vmul.f32 %v30, %v178
    %v208 = vmul.f32 %v31, %v183
    %v209 = vmul.f32 %v32, %v188
    %v210 = vmul.f32 %v33, %v193
    %v211 = vmul.f32 %v34, %v198
    %v212 = vmul.f32 %v35, %v203
    %v213 = vsel %vm52, %v205, 0.0
    %v214 = vsel %vm52, %v206, 0.0
    %v215 = vadd.f32 %v213, %v214
    %v216 = vsel %vm52, %v207, 0.0
    %v217 = vadd.f32 %v215, %v216
    %v218 = vsel %vm52, %v208, 0.0
    %v219 = vadd.f32 %v217, %v218
    %v220 = vsel %vm52, %v209, 0.0
    %v221 = vadd.f32 %v219, %v220
    %v222 = vsel %vm52, %v210, 0.0
    %v223 = vadd.f32 %v221, %v222
    %v224 = vsel %vm52, %v211, 0.0
    %v225 = vadd.f32 %v223, %v224
    %v226 = vsel %vm52, %v212, 0.0
    %v227 = vadd.f32 %v225, %v226
    %v228 = vld [vmem:[%s4] sm:$0xff]
    %v229 = vld [vmem:[%s4 + $0x8] sm:$0xff]
    %v230 = vld [vmem:[%s5] sm:$0xff]
    %v231 = vld [vmem:[%s5 + $0x8] sm:$0xff]
    %v232 = vld [vmem:[%s5 + $0x10] sm:$0xff]
    %v233 = vld [vmem:[%s5 + $0x18] sm:$0xff]
    %vm234 = vcmask 261120
    %v236 = vsel %vm234, %v227, 0
    %238 = vmatprep.subr.mxu0 0.0
    %239 = vmatpush1.msra.mxu0 %v230
    %240 = vmatprep.subr.mxu0 0.0
    %241 = vmatpush1.msra.mxu0 %v231
    %242 = vmatprep.subr.mxu0 0.0
    %243 = vmatpush1.msra.mxu0 %v232
    %244 = vmatprep.subr.mxu0 0.0
    %245 = vmatpush1.msra.mxu0 %v233
    %246 = vmatprep.subr.mxu0 0.0
    %247 = vmatpush1.msra.mxu0 0.0
    %248 = vmatprep.subr.mxu0 0.0
    %249 = vmatpush1.msra.mxu0 0.0
    %250 = vmatprep.subr.mxu0 0.0
    %251 = vmatpush1.msra.mxu0 0.0
    %252 = vmatprep.subr.mxu0 0.0
    %253 = vmatpush1.msra.mxu0 0.0
    %254 = vmatprep.subr.mxu0 0.0
    %255 = vmatpush1.msra.mxu0 0.0
    %256 = vmatprep.subr.mxu0 0.0
    %257 = vmatpush1.msra.mxu0 0.0
    %258 = vmatprep.subr.mxu0 0.0
    %259 = vmatpush1.msra.mxu0 0.0
    %260 = vmatprep.subr.mxu0 0.0
    %261 = vmatpush1.msra.mxu0 0.0
    %262 = vmatprep.subr.mxu0 0.0
    %263 = vmatpush1.msra.mxu0 0.0
    %264 = vmatprep.subr.mxu0 0.0
    %265 = vmatpush1.msra.mxu0 0.0
    %266 = vmatprep.subr.mxu0 0.0
    %267 = vmatpush1.msra.mxu0 0.0
    %268 = vmatprep.subr.mxu0 0.0
    %269 = vmatpush1.msra.mxu0 0.0
    %270 = vmatprep.subr.mxu0 0.0
    %271 = vmatpush1.msra.mxu0 0.0
    %272 = vmatprep.subr.mxu0 0.0
    %273 = vmatpush1.msra.mxu0 0.0
    %274 = vmatprep.subr.mxu0 0.0
    %275 = vmatpush1.msra.mxu0 0.0
    %276 = vmatprep.subr.mxu0 0.0
    %277 = vmatpush1.msra.mxu0 0.0
    %278 = vmatprep.subr.mxu0 0.0
    %279 = vmatpush1.msra.mxu0 0.0
    %280 = vmatprep.subr.mxu0 0.0
    %281 = vmatpush1.msra.mxu0 0.0
    %282 = vmatprep.subr.mxu0 0.0
    %283 = vmatpush1.msra.mxu0 0.0
    %284 = vmatprep.subr.mxu0 0.0
    %285 = vmatpush1.msra.mxu0 0.0
    %286 = vmatprep.subr.mxu0 0.0
    %287 = vmatpush1.msra.mxu0 0.0
    %288 = vmatprep.subr.mxu0 0.0
    %289 = vmatpush1.msra.mxu0 0.0
    %290 = vmatprep.subr.mxu0 0.0
    %291 = vmatpush1.msra.mxu0 0.0
    %292 = vmatprep.subr.mxu0 0.0
    %293 = vmatpush1.msra.mxu0 0.0
    %294 = vmatprep.subr.mxu0 0.0
    %295 = vmatpush1.msra.mxu0 0.0
    %296 = vmatprep.subr.mxu0 0.0
    %297 = vmatpush1.msra.mxu0 0.0
    %298 = vmatprep.subr.mxu0 0.0
    %299 = vmatpush1.msra.mxu0 0.0
    %300 = vmatprep.subr.mxu0 0.0
    %301 = vmatpush1.msra.mxu0 0.0
    %302 = vmatprep.mubr.f32.mxu0 0.0
    %303 = vmatmul.mubr.f32.gmra.mrb[0].mxu0 %v236
    %v304 = vpop.f32.mrb[0].mxu0
    %v305 = vadd.f32 0.0, %v304
    %v306 = vpop.f32.mrb[0].mxu0
    %307 = vdwg.mxu0
    %vm308 = vcmask 130048
    %v310 = vsel %vm308, %v27, 0
    %312 = vmatprep.subr.mxu0 0.0
    %313 = vmatpush1.msra.mxu0 %v228
    %314 = vmatprep.subr.mxu0 0.0
    %315 = vmatpush1.msra.mxu0 %v229
    %316 = vmatprep.subr.mxu0 0.0
    %317 = vmatpush1.msra.mxu0 0.0
    %318 = vmatprep.subr.mxu0 0.0
    %319 = vmatpush1.msra.mxu0 0.0
    %320 = vmatprep.subr.mxu0 0.0
    %321 = vmatpush1.msra.mxu0 0.0
    %322 = vmatprep.subr.mxu0 0.0
    %323 = vmatpush1.msra.mxu0 0.0
    %324 = vmatprep.subr.mxu0 0.0
    %325 = vmatpush1.msra.mxu0 0.0
    %326 = vmatprep.subr.mxu0 0.0
    %327 = vmatpush1.msra.mxu0 0.0
    %328 = vmatprep.subr.mxu0 0.0
    %329 = vmatpush1.msra.mxu0 0.0
    %330 = vmatprep.subr.mxu0 0.0
    %331 = vmatpush1.msra.mxu0 0.0
    %332 = vmatprep.subr.mxu0 0.0
    %333 = vmatpush1.msra.mxu0 0.0
    %334 = vmatprep.subr.mxu0 0.0
    %335 = vmatpush1.msra.mxu0 0.0
    %336 = vmatprep.subr.mxu0 0.0
    %337 = vmatpush1.msra.mxu0 0.0
    %338 = vmatprep.subr.mxu0 0.0
    %339 = vmatpush1.msra.mxu0 0.0
    %340 = vmatprep.subr.mxu0 0.0
    %341 = vmatpush1.msra.mxu0 0.0
    %342 = vmatprep.subr.mxu0 0.0
    %343 = vmatpush1.msra.mxu0 0.0
    %344 = vmatprep.subr.mxu0 0.0
    %345 = vmatpush1.msra.mxu0 0.0
    %346 = vmatprep.subr.mxu0 0.0
    %347 = vmatpush1.msra.mxu0 0.0
    %348 = vmatprep.subr.mxu0 0.0
    %349 = vmatpush1.msra.mxu0 0.0
    %350 = vmatprep.subr.mxu0 0.0
    %351 = vmatpush1.msra.mxu0 0.0
    %352 = vmatprep.subr.mxu0 0.0
    %353 = vmatpush1.msra.mxu0 0.0
    %354 = vmatprep.subr.mxu0 0.0
    %355 = vmatpush1.msra.mxu0 0.0
    %356 = vmatprep.subr.mxu0 0.0
    %357 = vmatpush1.msra.mxu0 0.0
    %358 = vmatprep.subr.mxu0 0.0
    %359 = vmatpush1.msra.mxu0 0.0
    %360 = vmatprep.subr.mxu0 0.0
    %361 = vmatpush1.msra.mxu0 0.0
    %362 = vmatprep.subr.mxu0 0.0
    %363 = vmatpush1.msra.mxu0 0.0
    %364 = vmatprep.subr.mxu0 0.0
    %365 = vmatpush1.msra.mxu0 0.0
    %366 = vmatprep.subr.mxu0 0.0
    %367 = vmatpush1.msra.mxu0 0.0
    %368 = vmatprep.subr.mxu0 0.0
    %369 = vmatpush1.msra.mxu0 0.0
    %370 = vmatprep.subr.mxu0 0.0
    %371 = vmatpush1.msra.mxu0 0.0
    %372 = vmatprep.subr.mxu0 0.0
    %373 = vmatpush1.msra.mxu0 0.0
    %374 = vmatprep.subr.mxu0 0.0
    %375 = vmatpush1.msra.mxu0 0.0
    %376 = vmatprep.mubr.f32.mxu0 0.0
    %377 = vmatmul.mubr.f32.gmra.mrb[0].mxu0 %v310
    %v378 = vpop.f32.mrb[0].mxu0
    %v379 = vadd.f32 %v305, %v378
    %v380 = vpop.f32.mrb[0].mxu0
    %381 = vdwg.mxu0
    %v382 = vtanh.pop %v379
    %vm383 = vcmask 123904
    %384 = vst.msk [vmem:[#allocation2] sm:$0x3] %vm383, %v382
    // Predicated region
    $region26: #{tpu_custom_call.1} parent=1 // pred_check
      _
    $region27: #{tpu_custom_call.1} parent=1 // pred_check_branch
      %386 = sbr.rel (0) target = $region29
    $region28: #{tpu_custom_call.1} parent=1 // pred_region
      %s388 = ssub.s32 32, 32
      %389 = vsyncadd [#allocation3], %s388
      %s391 = sshll.u32 [#allocation2], 4
      %s392 = int_to_ptr.vmem [resolvable:$true] %s391
      %394 = dma.vmem_to_hbm [thread:$0]  %s392, 32, %s6, [#allocation3]
    $region29: #{tpu_custom_call.1} parent=1 // pred_fallthru
      _
    // Predicated region
    $region30: #{tpu_custom_call.1} parent=1 // pred_check
      _
    $region31: #{tpu_custom_call.1} parent=1 // pred_check_branch
      %396 = sbr.rel (0) target = $region33
    $region32: #{tpu_custom_call.1} parent=1 // pred_region
      _
    $region33: #{tpu_custom_call.1} parent=1 // pred_fallthru
      _
    // Predicated region
    $region34: #{tpu_custom_call.1} parent=1 // pred_check
      _
    $region35: #{tpu_custom_call.1} parent=1 // pred_check_branch
      %398 = sbr.rel (0) target = $region37
    $region36: #{tpu_custom_call.1} parent=1 // pred_region
      %399 = dma.done [#allocation3], 32
    $region37: #{tpu_custom_call.1} parent=1 // pred_fallthru
      _
    // Predicated region
    $region38: #{tpu_custom_call.1} parent=1 // pred_check
      _
    $region39: #{tpu_custom_call.1} parent=1 // pred_check_branch
      %401 = sbr.rel (0) target = $region41
    $region40: #{tpu_custom_call.1} parent=1 // pred_region
      _
    $region41: #{tpu_custom_call.1} parent=1 // pred_fallthru
      _
    %402 = vsyncpa [#allocation3], 1

</llo_original>
